<compile_context>
chip_gen: v5e
topology: v5e:2x2
jax: 0.10.0
libtpu: 0.0.40
codegen_flags: <defaults>
</compile_context>

<pallas_src>
import functools

import jax
import jax.numpy as jnp
from jax.experimental import pallas as pl
from jax.experimental.pallas import tpu as pltpu

_LANE = 128
_SS_CHUNK = 512  # lane-slice width for chunked sum(x^2) accumulation


def _round_up(a, b):
    return (a + b - 1) // b * b


def _tpu_vmem_capacity():
    try:
        info = pltpu.get_tpu_info()
        for name in ("vmem_capacity_bytes", "vmem_bytes", "vmem_size_bytes"):
            cap = getattr(info, name, None)
            if cap:
                return int(cap)
    except Exception:
        pass
    return 64 << 20  # conservative default: v7x per-TensorCore VMEM


def _footprint_mult(itemsize):
    # in + out double-buffered (4x block) plus f32 working copies, each worth
    # (4 / itemsize) native blocks (conservative; the fused path's chunked
    # accumulation actually uses far less).
    return 4 + 2 * max(1, 4 // max(1, itemsize))


def _budgets(itemsize):
    """(per-block byte budget for x, vmem_limit ceiling) for this generation."""
    cap = _tpu_vmem_capacity()
    # ~100 MiB ceiling on 128-MiB parts (v5e/v6e), ~56 MiB on 64-MiB parts (v7x).
    ceiling = max(32 << 20, min(cap - (8 << 20), 100 << 20))
    budget = max(1 << 20, (ceiling - (4 << 20)) // _footprint_mult(itemsize))
    return budget, ceiling


def _vmem_limit(block_bytes, itemsize, ceiling):
    need = _footprint_mult(itemsize) * block_bytes + (4 << 20)
    return int(max(32 << 20, min(need, ceiling)))


def _choose_bn(n, per_image_bytes, budget):
    """Images per fused block: as big as the budget allows, but aim for >= ~8
    grid steps (keeps the DMA pipeline full and feeds both v7x TensorCores),
    never shrinking blocks below ~1 MiB."""
    bn_cap = max(1, budget // max(1, per_image_bytes))
    bn_steps = max(1, n // 8)
    bn_minsize = max(1, -(-(1 << 20) // max(1, per_image_bytes)))  # ceil
    return max(1, min(n, bn_cap, max(bn_steps, bn_minsize)))


# ---------------------------------------------------------------------------
# Fused path: full (bn, C, HW) slab per grid step, single HBM read + write.
# ---------------------------------------------------------------------------
def _gct_fused_kernel(x_ref, p_ref, o_ref, *, eps):
    # x_ref: (bn, C, HW); p_ref: (C, 3) = [alpha | beta | gamma]
    bn, C, hw = x_ref.shape
    p = p_ref[...].astype(jnp.float32)
    alpha, beta, gamma = p[:, 0:1], p[:, 1:2], p[:, 2:3]          # (C, 1)

    # sum(x^2) over the lane axis, accumulated over lane slices so no
    # full-tile f32 temporary stays live (matters for bf16 inputs / v7x VMEM).
    def accum(acc, sl):
        slf = sl.astype(jnp.float32)
        return acc + jnp.sum(slf * slf, axis=-1, keepdims=True)

    chunk = _SS_CHUNK
    n_full, tail = hw // chunk, hw % chunk
    ss = jnp.zeros((bn, C, 1), jnp.float32)
    if n_full > 8:
        def body(j, acc):
            start = pl.multiple_of(j * chunk, chunk)
            return accum(acc, x_ref[:, :, pl.ds(start, chunk)])
        ss = jax.lax.fori_loop(0, n_full, body, ss)
    else:
        for j in range(n_full):
            ss = accum(ss, x_ref[:, :, j * chunk:(j + 1) * chunk])
    if tail:
        ss = accum(ss, x_ref[:, :, n_full * chunk:hw])

    embedding = jnp.sqrt(ss + eps) * alpha                              # (bn, C, 1)
    mean_sq = jnp.mean(embedding * embedding, axis=1, keepdims=True)    # (bn, 1, 1)
    norm = gamma * jax.lax.rsqrt(mean_sq + eps)                         # (bn, C, 1)
    gate = (1.0 + jnp.tanh(embedding * norm + beta)).astype(o_ref.dtype)
    o_ref[...] = x_ref[...] * gate


def _gct_fused(x2, params, eps, budget, ceiling):
    N, C, HW = x2.shape
    itemsize = x2.dtype.itemsize
    per_image_bytes = C * HW * itemsize
    bn = _choose_bn(N, per_image_bytes, budget)
    block_bytes = bn * per_image_bytes

    kernel = functools.partial(_gct_fused_kernel, eps=eps)
    return pl.pallas_call(
        kernel,
        out_shape=jax.ShapeDtypeStruct((N, C, HW), x2.dtype),
        grid_spec=pltpu.PrefetchScalarGridSpec(
            num_scalar_prefetch=0,
            grid=(pl.cdiv(N, bn),),
            in_specs=[
                pl.BlockSpec((bn, C, HW), lambda i: (i, 0, 0)),
                pl.BlockSpec((C, 3), lambda i: (0, 0)),
            ],
            out_specs=pl.BlockSpec((bn, C, HW), lambda i: (i, 0, 0)),
        ),
        compiler_params=pltpu.CompilerParams(
            dimension_semantics=("parallel",),
            vmem_limit_bytes=_vmem_limit(block_bytes, itemsize, ceiling),
        ),
    )(x2, params)


# ---------------------------------------------------------------------------
# Split path: one two-phase kernel, grid (N, 2, n_chunks).
#   phase 0: accumulate sum(x^2) over HW chunks into a (C,1) scratch.
#   phase 1: compute the gate once (h == 0), re-stream chunks and apply.
# ---------------------------------------------------------------------------
def _gct_split_kernel(x_ref, p_ref, o_ref, ss_ref, gate_ref, *, eps, hw, hw_chunk):
    phase = pl.program_id(1)
    h = pl.program_id(2)

    @pl.when(phase == 0)
    def _reduce():
        @pl.when(h == 0)
        def _():
            ss_ref[...] = jnp.zeros_like(ss_ref)
        xf = x_ref[...].astype(jnp.float32)                 # (C, hw_chunk)
        if hw % hw_chunk:                                   # mask ragged tail lanes
            lane = jax.lax.broadcasted_iota(jnp.int32, (1, hw_chunk), 1)
            xf = jnp.where(h * hw_chunk + lane < hw, xf, 0.0)
        ss_ref[...] += jnp.sum(xf * xf, axis=-1, keepdims=True)

    @pl.when(phase == 1)
    def _apply():
        @pl.when(h == 0)
        def _():
            p = p_ref[...].astype(jnp.float32)
            alpha, beta, gamma = p[:, 0:1], p[:, 1:2], p[:, 2:3]     # (C, 1)
            embedding = jnp.sqrt(ss_ref[...] + eps) * alpha          # (C, 1)
            mean_sq = jnp.mean(embedding * embedding, axis=0, keepdims=True)
            norm = gamma * jax.lax.rsqrt(mean_sq + eps)
            gate_ref[...] = 1.0 + jnp.tanh(embedding * norm + beta)
        o_ref[...] = x_ref[...] * gate_ref[...].astype(o_ref.dtype)


def _gct_split(x2, params, eps, budget, ceiling):
    N, C, HW = x2.shape
    itemsize = x2.dtype.itemsize

    # Balanced, lane-aligned chunks over HW (no wrapper-side padding): as large
    # as the budget allows, split evenly so the last chunk is not mostly ragged
    # overhang.
    max_chunk = max(_LANE, (budget // max(1, C * itemsize)) // _LANE * _LANE)
    n_chunks = pl.cdiv(HW, max_chunk)
    hw_chunk = _round_up(pl.cdiv(HW, n_chunks), _LANE)
    if hw_chunk >= HW:      # single chunk: use the exact full-dim extent
        hw_chunk = HW
    n_chunks = pl.cdiv(HW, hw_chunk)
    block_bytes = C * hw_chunk * itemsize

    kernel = functools.partial(_gct_split_kernel, eps=eps, hw=HW, hw_chunk=hw_chunk)
    return pl.pallas_call(
        kernel,
        out_shape=jax.ShapeDtypeStruct((N, C, HW), x2.dtype),
        grid_spec=pltpu.PrefetchScalarGridSpec(
            num_scalar_prefetch=0,
            grid=(N, 2, n_chunks),
            in_specs=[
                pl.BlockSpec((pl.Squeezed(), C, hw_chunk), lambda n, p, h: (n, 0, h)),
                pl.BlockSpec((C, 3), lambda n, p, h: (0, 0)),
            ],
            # During the reduce phase (p == 0) the output block index is pinned
            # to (n, 0, 0); the apply phase rewrites that block first, so no
            # stale data is ever written back and each block is stored once.
            out_specs=pl.BlockSpec((pl.Squeezed(), C, hw_chunk),
                                   lambda n, p, h: (n, 0, h * p)),
            scratch_shapes=[pltpu.VMEM((C, 1), jnp.float32),   # ss
                            pltpu.VMEM((C, 1), jnp.float32)],  # gate
        ),
        compiler_params=pltpu.CompilerParams(
            dimension_semantics=("parallel", "arbitrary", "arbitrary"),
            vmem_limit_bytes=_vmem_limit(block_bytes, itemsize, ceiling),
        ),
    )(x2, params)


# ---------------------------------------------------------------------------
# Public entry point + pure-JAX reference
# ---------------------------------------------------------------------------
def gct_pallas(x, alpha, beta, gamma, eps: float = 1e-5, block_budget_bytes=None):
    """x: (N, C, H, W); alpha/beta/gamma: (1, C, 1, 1) as in the PyTorch module."""
    N, C, H, W = x.shape
    HW = H * W
    itemsize = x.dtype.itemsize

    # Pack the three per-channel parameter vectors into a single (C, 3) block.
    params = jnp.concatenate(
        [alpha.reshape(C, 1), beta.reshape(C, 1), gamma.reshape(C, 1)], axis=1)
    x2 = x.reshape(N, C, HW)   # contiguous view: no pad, no copy

    auto_budget, ceiling = _budgets(itemsize)
    budget = auto_budget if block_budget_bytes is None else int(block_budget_bytes)

    per_image_bytes = C * HW * itemsize
    if per_image_bytes <= budget:
        out2 = _gct_fused(x2, params, eps, budget, ceiling)
    else:
        out2 = _gct_split(x2, params, eps, budget, ceiling)
    return out2.reshape(N, C, H, W)


def gct_reference(x, alpha, beta, gamma, eps: float = 1e-5):
    """Pure-JAX reference matching the PyTorch forward exactly."""
    embedding = jnp.sqrt(jnp.sum(x * x, axis=(2, 3), keepdims=True) + eps) * alpha
    norm = gamma / jnp.sqrt(jnp.mean(embedding * embedding, axis=1, keepdims=True) + eps)
    gate = 1.0 + jnp.tanh(embedding * norm + beta)
    return x * gate


if __name__ == "__main__":
    N, C, H, W = 2, 4, 16, 16

    key = jax.random.PRNGKey(0)
    kx, ka, kb, kg = jax.random.split(key, 4)

    x = jax.random.normal(kx, (N, C, H, W), dtype=jnp.float32)
    # Module __init__ shapes: (1, C, 1, 1). Default init (ones/zeros) makes the
    # gate trivially 1, so use non-trivial values to exercise the math.
    alpha = 1.0 + 0.1 * jax.random.normal(ka, (1, C, 1, 1), dtype=jnp.float32)
    beta = 0.1 * jax.random.normal(kb, (1, C, 1, 1), dtype=jnp.float32)
    gamma = 0.1 * jax.random.normal(kg, (1, C, 1, 1), dtype=jnp.float32)

    ref = gct_reference(x, alpha, beta, gamma)

    # 1) Fused single-kernel path (generation-aware default budget).
    out_fused = jax.block_until_ready(gct_pallas(x, alpha, beta, gamma))
    assert out_fused.shape == ref.shape == (N, C, H, W)
    assert jnp.allclose(out_fused, ref, atol=1e-5, rtol=1e-5), (
        f"fused max abs err = {jnp.max(jnp.abs(out_fused - ref))}")

    # 2) Split two-phase path (what very large feature maps would take), forced
    #    here with a tiny block budget.
    out_split = jax.block_until_ready(
        gct_pallas(x, alpha, beta, gamma, block_budget_bytes=1024))
    assert jnp.allclose(out_split, ref, atol=1e-5, rtol=1e-5), (
        f"split max abs err = {jnp.max(jnp.abs(out_split - ref))}")

    # 3) Ragged spatial size (H*W = 49, not a multiple of 128): fused path with
    #    a full-dim (unpadded) lane block.
    xr = jax.random.normal(kx, (N, C, 7, 7), dtype=jnp.float32)
    refr = gct_reference(xr, alpha, beta, gamma)
    outr = jax.block_until_ready(gct_pallas(xr, alpha, beta, gamma))
    assert jnp.allclose(outr, refr, atol=1e-5, rtol=1e-5), (
        f"ragged fused max abs err = {jnp.max(jnp.abs(outr - refr))}")

    # 4) Ragged spatial size on the split path (exercises in-kernel tail mask).
    outr_split = jax.block_until_ready(
        gct_pallas(xr, alpha, beta, gamma, block_budget_bytes=512))
    assert jnp.allclose(outr_split, refr, atol=1e-5, rtol=1e-5), (
        f"ragged split max abs err = {jnp.max(jnp.abs(outr_split - refr))}")

    print("KERNEL_OK")
</pallas_src>

<mosaic_0001>
module attributes {stable_mosaic.version = 11 : i64} {
  func.func @_gct_fused_kernel(%arg0: i32, %arg1: memref<2x4x256xf32, #tpu.memory_space<vmem>>, %arg2: memref<4x3xf32, #tpu.memory_space<vmem>>, %arg3: memref<2x4x256xf32, #tpu.memory_space<vmem>>) attributes {dimension_semantics = [#tpu.dimension_semantics<parallel>], iteration_bounds = array<i64: 1>, scalar_prefetch = 0 : i64, scratch_operands = 0 : i64, tpu.core_type = #tpu.core_type<tc>, window_params = [{transform_indices = @transform_0, window_bounds = array<i64: 2, 4, 256>}, {pipeline_mode = #tpu.pipeline_mode<synchronous>, transform_indices = @transform_1, window_bounds = array<i64: 4, 3>}, {transform_indices = @transform_2, window_bounds = array<i64: 2, 4, 256>}]} {
    %c0 = arith.constant 0 : index
    %c0_0 = arith.constant 0 : index
    %0 = vector.load %arg2[%c0, %c0_0] : memref<4x3xf32, #tpu.memory_space<vmem>>, vector<4x3xf32>
    %1 = vector.extract_strided_slice %0 {offsets = [0, 0], sizes = [4, 1], strides = [1, 1]} : vector<4x3xf32> to vector<4x1xf32>
    %2 = vector.extract_strided_slice %0 {offsets = [0, 1], sizes = [4, 1], strides = [1, 1]} : vector<4x3xf32> to vector<4x1xf32>
    %3 = vector.extract_strided_slice %0 {offsets = [0, 2], sizes = [4, 1], strides = [1, 1]} : vector<4x3xf32> to vector<4x1xf32>
    %cst = arith.constant 0.000000e+00 : f32
    %4 = vector.broadcast %cst : f32 to vector<2x4x1xf32>
    %c0_1 = arith.constant 0 : index
    %c0_2 = arith.constant 0 : index
    %c0_3 = arith.constant 0 : index
    %5 = vector.load %arg1[%c0_1, %c0_2, %c0_3] : memref<2x4x256xf32, #tpu.memory_space<vmem>>, vector<2x4x256xf32>
    %6 = arith.mulf %5, %5 : vector<2x4x256xf32>
    %cst_4 = arith.constant dense<0.000000e+00> : vector<2x4xf32>
    %7 = vector.multi_reduction <add>, %6, %cst_4 [2] : vector<2x4x256xf32> to vector<2x4xf32>
    %8 = vector.shape_cast %7 : vector<2x4xf32> to vector<2x4x1xf32>
    %9 = arith.addf %4, %8 : vector<2x4x1xf32>
    %cst_5 = arith.constant 9.99999974E-6 : f32
    %10 = vector.broadcast %cst_5 : f32 to vector<2x4x1xf32>
    %11 = arith.addf %9, %10 : vector<2x4x1xf32>
    %12 = math.sqrt %11 : vector<2x4x1xf32>
    %13 = vector.shape_cast %1 : vector<4x1xf32> to vector<1x4x1xf32>
    %14 = vector.broadcast %13 : vector<1x4x1xf32> to vector<2x4x1xf32>
    %15 = arith.mulf %12, %14 : vector<2x4x1xf32>
    %16 = arith.mulf %15, %15 : vector<2x4x1xf32>
    %cst_6 = arith.constant dense<0.000000e+00> : vector<2x1xf32>
    %17 = vector.multi_reduction <add>, %16, %cst_6 [1] : vector<2x4x1xf32> to vector<2x1xf32>
    %18 = vector.shape_cast %17 : vector<2x1xf32> to vector<2x1x1xf32>
    %cst_7 = arith.constant 4.000000e+00 : f32
    %19 = vector.broadcast %cst_7 : f32 to vector<2x1x1xf32>
    %20 = arith.divf %18, %19 : vector<2x1x1xf32>
    %cst_8 = arith.constant 9.99999974E-6 : f32
    %21 = vector.broadcast %cst_8 : f32 to vector<2x1x1xf32>
    %22 = arith.addf %20, %21 : vector<2x1x1xf32>
    %23 = math.rsqrt %22 : vector<2x1x1xf32>
    %24 = vector.shape_cast %3 : vector<4x1xf32> to vector<1x4x1xf32>
    %25 = vector.broadcast %24 : vector<1x4x1xf32> to vector<2x4x1xf32>
    %26 = vector.broadcast %23 : vector<2x1x1xf32> to vector<2x4x1xf32>
    %27 = arith.mulf %25, %26 : vector<2x4x1xf32>
    %28 = arith.mulf %15, %27 : vector<2x4x1xf32>
    %29 = vector.shape_cast %2 : vector<4x1xf32> to vector<1x4x1xf32>
    %30 = vector.broadcast %29 : vector<1x4x1xf32> to vector<2x4x1xf32>
    %31 = arith.addf %28, %30 : vector<2x4x1xf32>
    %32 = math.tanh %31 : vector<2x4x1xf32>
    %cst_9 = arith.constant 1.000000e+00 : f32
    %33 = vector.broadcast %cst_9 : f32 to vector<2x4x1xf32>
    %34 = arith.addf %33, %32 : vector<2x4x1xf32>
    %c0_10 = arith.constant 0 : index
    %c0_11 = arith.constant 0 : index
    %c0_12 = arith.constant 0 : index
    %35 = vector.load %arg1[%c0_10, %c0_11, %c0_12] : memref<2x4x256xf32, #tpu.memory_space<vmem>>, vector<2x4x256xf32>
    %36 = vector.broadcast %34 : vector<2x4x1xf32> to vector<2x4x256xf32>
    %37 = arith.mulf %35, %36 : vector<2x4x256xf32>
    %c0_13 = arith.constant 0 : index
    %c0_14 = arith.constant 0 : index
    %c0_15 = arith.constant 0 : index
    %38 = vector.load %arg3[%c0_13, %c0_14, %c0_15] : memref<2x4x256xf32, #tpu.memory_space<vmem>>, vector<2x4x256xf32>
    tpu.vector_store %arg3[%c0_13, %c0_14, %c0_15], %37 {strides = array<i32>} : memref<2x4x256xf32, #tpu.memory_space<vmem>>, vector<2x4x256xf32>,
    return
  }
  func.func @transform_0(%arg0: i32) -> (i32, i32, i32) {
    %c0_i32 = arith.constant 0 : i32
    %c0_i32_0 = arith.constant 0 : i32
    %c0_i32_1 = arith.constant 0 : i32
    return %arg0, %c0_i32, %c0_i32_0 : i32, i32, i32
  }
  func.func @transform_1(%arg0: i32) -> (i32, i32) {
    %c0_i32 = arith.constant 0 : i32
    %c0_i32_0 = arith.constant 0 : i32
    %c0_i32_1 = arith.constant 0 : i32
    return %c0_i32, %c0_i32_0 : i32, i32
  }
  func.func @transform_2(%arg0: i32) -> (i32, i32, i32) {
    %c0_i32 = arith.constant 0 : i32
    %c0_i32_0 = arith.constant 0 : i32
    %c0_i32_1 = arith.constant 0 : i32
    return %arg0, %c0_i32, %c0_i32_0 : i32, i32, i32
  }
}

</mosaic_0001>

<llo_original>
// kernel: tpu_custom_call.1
$region0: #{tpu_custom_call.1}
  #allocation0 [shape = 'u32[]', space=smem, size = 0x4, offset = 0x4, fixed_abs, tag = 'smem constant byte address 0x4 - core index']
  #allocation1 [shape = 'u32[72,128]{1,0:T(1,128)}', space=vmem, size = 0x9000, scoped, tag = 'internal scratch']
  %s0 = inlined_call_operand.hbm [shape: f32[2,4,256], index: 0, kind: input, shape index: {}]
  %s1 = inlined_call_operand.hbm [shape: f32[4,3], index: 1, kind: input, shape index: {}]
  %s2 = inlined_call_operand.hbm [shape: f32[2,4,256], index: 2, kind: output, shape index: {}]
  %s3 = sld [smem:[#allocation0]]
  $region26: #{tpu_custom_call.1} parent=0
    _
  %s5 = ssub.s32 1, %s3
  %s6 = scalar_select 0, %s5, %s3
  $region1: #{tpu_custom_call.1} parent=0
    #allocation2 [shape = 'u8[8192]{0}', space=vmem, size = 0x2000, scoped, tag = 'input window, operand 0, single buffered']
    #allocation3 [shape = 's32[1]{0}', space=sflag, size = 0x4, scoped, tag = 'scoped memory for tpu_custom_call.1']
    #allocation4 [shape = 's32[1]{0}', space=sflag, size = 0x4, scoped, tag = 'scoped memory for tpu_custom_call.1']
    #allocation5 [shape = 'u8[2048]{0}', space=vmem, size = 0x800, scoped, tag = 'input window, operand 1, single buffered']
    #allocation6 [shape = 's32[1]{0}', space=sflag, size = 0x4, scoped, tag = 'scoped memory for tpu_custom_call.1']
    #allocation7 [shape = 'u8[8192]{0}', space=vmem, size = 0x2000, scoped, tag = 'output window, operand 0, single buffered']
    %7 = vsyncpa [#allocation3], 0
    %8 = vsyncpa [#allocation6], 0
    %9 = vsyncpa [#allocation4], 0
    // Predicated region
    $region2: #{tpu_custom_call.1} parent=1 // pred_check
      _
    $region3: #{tpu_custom_call.1} parent=1 // pred_check_branch
      %11 = sbr.rel (0) target = $region5
    $region4: #{tpu_custom_call.1} parent=1 // pred_region
      %13 = vsyncadd [#allocation3], 0
      %s14 = sshll.u32 %s0, 4
      %s15 = int_to_ptr.hbm [resolvable:$true] %s14
      %s16 = sshll.u32 [#allocation2], 4
      %s17 = int_to_ptr.vmem [resolvable:$true] %s16
      %22 = dma.hbm_to_vmem [thread:$0]  %s15, 256, %s17, [#allocation3], 128, 128, 8
    $region5: #{tpu_custom_call.1} parent=1 // pred_fallthru
      _
    // Predicated region
    $region6: #{tpu_custom_call.1} parent=1 // pred_check
      _
    $region7: #{tpu_custom_call.1} parent=1 // pred_check_branch
      %24 = sbr.rel (0) target = $region9
    $region8: #{tpu_custom_call.1} parent=1 // pred_region
      %26 = vsyncadd [#allocation6], 0
      %s28 = sshll.u32 %s1, 4
      %s29 = int_to_ptr.hbm [resolvable:$true] %s28
      %s30 = sshll.u32 [#allocation5], 4
      %s31 = int_to_ptr.vmem [resolvable:$true] %s30
      %33 = dma.hbm_to_vmem [thread:$0]  %s29, 64, %s31, [#allocation6]
    $region9: #{tpu_custom_call.1} parent=1 // pred_fallthru
      _
    // Predicated region
    $region10: #{tpu_custom_call.1} parent=1 // pred_check
      _
    $region11: #{tpu_custom_call.1} parent=1 // pred_check_branch
      %35 = sbr.rel (0) target = $region13
    $region12: #{tpu_custom_call.1} parent=1 // pred_region
      %37 = dma.done [#allocation3], 256
    $region13: #{tpu_custom_call.1} parent=1 // pred_fallthru
      _
    // Predicated region
    $region14: #{tpu_custom_call.1} parent=1 // pred_check
      _
    $region15: #{tpu_custom_call.1} parent=1 // pred_check_branch
      %39 = sbr.rel (0) target = $region17
    $region16: #{tpu_custom_call.1} parent=1 // pred_region
      %41 = dma.done [#allocation6], 64
    $region17: #{tpu_custom_call.1} parent=1 // pred_fallthru
      _
    %v42 = vld [vmem:[#allocation5] sm:$0xf]
    %v43 = vld [vmem:[#allocation2] sm:$0xff]
    %v44 = vld [vmem:[#allocation2 + $0x8] sm:$0xff]
    %v45 = vmul.f32 %v43, %v43
    %v46 = vmul.f32 %v44, %v44
    %49 = vst [vmem:[#allocation1] ss:$2 sm:$0xff] %v45
    %v50 = vld.sshfl [vmem:[#allocation1] sm:$0xff pattern:$0x75316420]
    %v51 = vld.sshfl [vmem:[#allocation1 + $0x8] sm:$0xff pattern:$0x75316420]
    %s52 = scalar_lea.vmem [#allocation1], 16
    %53 = vst [vmem:[%s52] ss:$2 sm:$0xff] %v46
    %v54 = vld.sshfl [vmem:[#allocation1 + $0x10] sm:$0xff pattern:$0x75316420]
    %v55 = vld.sshfl [vmem:[#allocation1 + $0x18] sm:$0xff pattern:$0x75316420]
    %vm60 = vcmask 1043456
    %v61 = vsel %vm60, %v50, 0.0
    %v62 = vsel %vm60, %v51, 0.0
    %v63 = vadd.f32 %v61, %v62
    %64 = vadd.xlane.f32.xlu0 %v63
    %v65 = vpop.xlane.xlu0 %64
    %v66 = vsel %vm60, %v54, 0.0
    %v67 = vsel %vm60, %v55, 0.0
    %v68 = vadd.f32 %v66, %v67
    %69 = vadd.xlane.f32.xlu0 %v68
    %v70 = vpop.xlane.xlu0 %69
    %v71 = vadd.f32 %v65, 0.0
    %v72 = vadd.f32 %v70, 0.0
    %v73 = vadd.f32 %v71, 1e-05
    %v74 = vadd.f32 %v72, 1e-05
    %v75 = vrsqrt.pop %v73
    %v76 = vmul.f32 %v75, %v73
    %v77 = vmul.f32 %v76, %v75
    %v78 = vmul.f32 0.5, %v77
    %v79 = vsub.f32 1.5, %v78
    %v80 = vmul.f32 %v75, %v79
    %v81 = vmul.f32 %v73, %v80
    %vm82 = vcmp.eq.f32.partialorder %v73, inf
    %v83 = vsel %vm82, %v73, %v81
    %vm84 = vcmp.eq.f32.partialorder %v73, 0.0
    %v85 = vand.u32 %v73, 2147483648
    %v86 = vsel %vm84, %v85, %v83
    %v87 = vrsqrt.pop %v74
    %v88 = vmul.f32 %v87, %v74
    %v89 = vmul.f32 %v88, %v87
    %v90 = vmul.f32 0.5, %v89
    %v91 = vsub.f32 1.5, %v90
    %v92 = vmul.f32 %v87, %v91
    %v93 = vmul.f32 %v74, %v92
    %vm94 = vcmp.eq.f32.partialorder %v74, inf
    %v95 = vsel %vm94, %v74, %v93
    %vm96 = vcmp.eq.f32.partialorder %v74, 0.0
    %v97 = vand.u32 %v74, 2147483648
    %v98 = vsel %vm96, %v97, %v95
    %v99 = vmul.f32 %v86, %v42
    %v100 = vmul.f32 %v98, %v42
    %v101 = vmul.f32 %v99, %v99
    %v102 = vmul.f32 %v100, %v100
    %vm103 = vcmask 3072
    %v104 = vsel %vm103, %v101, 0.0
    %v105 = vrot.slane %v104, 4
    %v106 = vadd.f32 %v104, %v105
    %v107 = vrot.slane %v106, 2
    %v108 = vadd.f32 %v106, %v107
    %v109 = vrot.slane %v108, 1
    %v110 = vadd.f32 %v108, %v109
    %v111 = vsel %vm103, %v102, 0.0
    %v112 = vrot.slane %v111, 4
    %v113 = vadd.f32 %v111, %v112
    %v114 = vrot.slane %v113, 2
    %v115 = vadd.f32 %v113, %v114
    %v116 = vrot.slane %v115, 1
    %v117 = vadd.f32 %v115, %v116
    %v118 = vrcp.pop 4.0
    %v119 = vmul.f32 4.0, %v118
    %v120 = vsub.f32 1.0, %v119
    %v121 = vmul.f32 %v118, %v120
    %v122 = vadd.f32 %v118, %v121
    %vm123 = vweird.f32 %v118
    %v124 = vsel %vm123, %v118, %v122
    %v125 = vmul.f32 %v110, %v124
    %v126 = vmul.f32 %v117, %v124
    %v127 = vadd.f32 %v125, 1e-05
    %v128 = vadd.f32 %v126, 1e-05
    %v129 = vrsqrt.pop %v127
    %v130 = vmul.f32 %v129, %v127
    %v131 = vmul.f32 %v130, %v129
    %v132 = vmul.f32 0.5, %v131
    %v133 = vsub.f32 1.5, %v132
    %v134 = vmul.f32 %v129, %v133
    %vm135 = vweird.f32 %v127
    %vm136 = vweird.f32 %v129
    %vm137 = vmor %vm135, %vm136
    %v138 = vsel %vm137, %v129, %v134
    %v139 = vrsqrt.pop %v128
    %v140 = vmul.f32 %v139, %v128
    %v141 = vmul.f32 %v140, %v139
    %v142 = vmul.f32 0.5, %v141
    %v143 = vsub.f32 1.5, %v142
    %v144 = vmul.f32 %v139, %v143
    %vm145 = vweird.f32 %v128
    %vm146 = vweird.f32 %v139
    %vm147 = vmor %vm145, %vm146
    %v148 = vsel %vm147, %v139, %v144
    %151 = vrot.lane.b32.xlu0 %v138, 2
    %v152 = vpop.permute.xlu0 %151
    %153 = vrot.lane.b32.xlu0 %v148, 2
    %v154 = vpop.permute.xlu0 %153
    %v157 = vmul.f32 %v42, %v152
    %v158 = vmul.f32 %v42, %v154
    %161 = vrot.lane.b32.xlu0 %v157, 126
    %v162 = vpop.permute.xlu0 %161
    %163 = vrot.lane.b32.xlu0 %v158, 126
    %v164 = vpop.permute.xlu0 %163
    %v167 = vmul.f32 %v99, %v162
    %v168 = vmul.f32 %v100, %v164
    %170 = vrot.lane.b32.xlu0 %v42, 127
    %v171 = vpop.permute.xlu0 %170
    %v173 = vadd.f32 %v167, %v171
    %v174 = vadd.f32 %v168, %v171
    %v175 = vtanh.pop %v173
    %v176 = vtanh.pop %v174
    %v177 = vadd.f32 %v175, 1.0
    %v178 = vadd.f32 %v176, 1.0
    %180 = vset.pattern.permute.xlu0 0
    %181 = vperm.xlu0 %180, %v177
    %v182 = vpop.permute.xlu0 %181
    %184 = vset.pattern.permute.xlu0 0
    %185 = vperm.xlu0 %184, %v178
    %v186 = vpop.permute.xlu0 %185
    %v188 = vunpack.c.l.s4 839922192
    %v189 = vunpack.c.0.s8 %v188
    %v190 = vperm.slane %v182, %v189
    %v192 = vunpack.c.l.s4 839922192
    %v193 = vunpack.c.0.s8 %v192
    %v194 = vperm.slane %v186, %v193
    %v197 = vmul.f32 %v43, %v190
    %v198 = vmul.f32 %v44, %v194
    %199 = vst [vmem:[#allocation7] sm:$0xff] %v197
    %200 = vst [vmem:[#allocation7 + $0x8] sm:$0xff] %v198
    // Predicated region
    $region18: #{tpu_custom_call.1} parent=1 // pred_check
      _
    $region19: #{tpu_custom_call.1} parent=1 // pred_check_branch
      %202 = sbr.rel (0) target = $region21
    $region20: #{tpu_custom_call.1} parent=1 // pred_region
      %204 = vsyncadd [#allocation4], 0
      %s205 = sshll.u32 [#allocation7], 4
      %s206 = int_to_ptr.vmem [resolvable:$true] %s205
      %s207 = sshll.u32 %s2, 4
      %s208 = int_to_ptr.hbm [resolvable:$true] %s207
      %213 = dma.vmem_to_hbm [thread:$0]  %s206, 256, %s208, [#allocation4], 128, 128, 8
    $region21: #{tpu_custom_call.1} parent=1 // pred_fallthru
      _
    // Predicated region
    $region22: #{tpu_custom_call.1} parent=1 // pred_check
      _
    $region23: #{tpu_custom_call.1} parent=1 // pred_check_branch
      %215 = sbr.rel (0) target = $region25
    $region24: #{tpu_custom_call.1} parent=1 // pred_region
      %217 = dma.done [#allocation4], 256
    $region25: #{tpu_custom_call.1} parent=1 // pred_fallthru
      _
    %218 = vsyncpa [#allocation3], 1
    %219 = vsyncpa [#allocation6], 1
    %220 = vsyncpa [#allocation4], 1

</llo_original>
